<compile_context>
chip_gen: v5e
topology: v5e:2x2
jax: 0.10.0
libtpu: 0.0.40
codegen_flags: <defaults>
</compile_context>

<pallas_src>
import functools

import jax
import jax.numpy as jnp
from jax.experimental import pallas as pl
from jax.experimental.pallas import tpu as pltpu


def _ru(x, m):
    return (x + m - 1) // m * m


def _layout(value_size, option_dim, hidden_size):
    """Row / lane layout of the packed weight slab and packed bias row."""
    V, O, H = value_size, option_dim, hidden_size
    C = _ru(4 * H, 128)                   # tight-packed gate tile width (>= 128 lanes)
    off_px = 0                            # beta_pre_fc weight, x part       (V, H)
    off_po = off_px + _ru(V, 8)           # beta_pre_fc weight, option part  (O, H)
    off_ih = off_po + _ru(O, 8)           # LSTM W_ih, tight-packed          (H, 4H)
    off_hh = off_ih + _ru(H, 8)           # LSTM W_hh, tight-packed          (H, 4H)
    off_bt = off_hh + _ru(H, 8)           # beta_layer weight, column 0      (H, 1)
    rows = off_bt + _ru(H, 8)
    return dict(cols=C, off_px=off_px, off_po=off_po, off_ih=off_ih,
                off_hh=off_hh, off_bt=off_bt, rows=rows)


def beta_policy_kernel(x_ref, opt_ref, st_ref, w_ref, b_ref,
                       beta_ref, st_out_ref,
                       *, V, O, H, C, BW,
                       off_px, off_po, off_ih, off_hh, off_bt):
    x = x_ref[...]                                     # (bb, V)
    opt = opt_ref[...]                                 # (bb, O)
    hx = st_ref[:, :H]                                 # packed state: hx | cx
    cx = st_ref[:, H:]

    # beta_pre_fc: Linear(V+O, H) + ReLU.  Two dots == one dot on concat([x, opt]).
    pre = (jnp.dot(x, w_ref[off_px:off_px + V, :H],
                   preferred_element_type=jnp.float32)
           + jnp.dot(opt, w_ref[off_po:off_po + O, :H],
                     preferred_element_type=jnp.float32)
           + b_ref[:, :H])
    pre = jnp.maximum(pre, 0.0)                        # (bb, H)

    # beta_rnn: one LSTM step.  PyTorch gate order i, f, g, o; gate g occupies
    # lanes [g*H, (g+1)*H) of a tight 4*H-wide tile (fused b_ih + b_hh bias).
    gates = (jnp.dot(pre, w_ref[off_ih:off_ih + H, :4 * H],
                     preferred_element_type=jnp.float32)
             + jnp.dot(hx, w_ref[off_hh:off_hh + H, :4 * H],
                       preferred_element_type=jnp.float32)
             + b_ref[:, C:C + 4 * H])                  # (bb, 4H)

    # Two full-tile EUP passes instead of four quarter-width ones; the per-gate
    # extraction is a static lane slice (lane realignment lands on the idle XLU).
    sig = jax.nn.sigmoid(gates)
    tnh = jnp.tanh(gates)
    i_g = sig[:, 0 * H:1 * H]
    f_g = sig[:, 1 * H:2 * H]
    g_g = tnh[:, 2 * H:3 * H]
    o_g = sig[:, 3 * H:4 * H]

    cy = f_g * cx + i_g * g_g                          # (bb, H)
    hy = o_g * jnp.tanh(cy)                            # (bb, H)
    st_out_ref[:, :H] = hy                             # packed new state: hy | cy
    st_out_ref[:, H:] = cy

    # beta_layer: Linear(H, 1) + sigmoid.  Dot at a full 128-lane width, then
    # slice to the output width BW (128 for the latency regime, 8 for large batch).
    bw = min(C, 128)
    bfull = (jnp.dot(hy, w_ref[off_bt:off_bt + H, :bw],
                     preferred_element_type=jnp.float32)
             + b_ref[:, 2 * C:2 * C + bw])             # (bb, bw)
    beta_ref[...] = jax.nn.sigmoid(bfull[:, :BW])      # real value in column 0


def build_beta_policy(value_size, option_dim, hidden_size, batch, *,
                      batch_block=1024):
    V, O, H = value_size, option_dim, hidden_size
    L = _layout(V, O, H)
    C = L["cols"]

    # Batch tile: whole batch when tiny; otherwise big 8-aligned tiles, capped so
    # that batch >= 16 always yields grid >= 2 (lets v7x's second TC see work).
    bb = min(batch, batch_block)
    if batch >= 16:
        bb = min(bb, _ru(pl.cdiv(batch, 2), 8))
    grid = (pl.cdiv(batch, bb),)

    # Lane-dense (B, 128) beta slab for the tiny-batch latency regime; shrink to
    # (B, 8) when large batches make the kernel HBM-writeback bound.
    BW = 8 if batch >= 512 else min(C, 128)

    kernel = functools.partial(
        beta_policy_kernel, V=V, O=O, H=H, C=C, BW=BW,
        off_px=L["off_px"], off_po=L["off_po"], off_ih=L["off_ih"],
        off_hh=L["off_hh"], off_bt=L["off_bt"])

    batched = lambda i: (i, 0)
    whole = lambda i: (0, 0)

    flops = batch * (2 * (V + O) * H + 16 * H * H + 2 * H * min(C, 128))
    transc = batch * (2 * 4 * H + H + min(C, 128))
    bytes_accessed = 4 * (batch * (V + O + 4 * H + BW) + L["rows"] * C + 3 * C)

    call = pl.pallas_call(
        kernel,
        grid=grid,
        in_specs=[
            pl.BlockSpec((bb, V), batched),                    # x
            pl.BlockSpec((bb, O), batched),                    # option
            pl.BlockSpec((bb, 2 * H), batched),                # packed state hx|cx
            pl.BlockSpec((L["rows"], C), whole),               # packed weight slab
            pl.BlockSpec((1, 3 * C), whole),                   # packed bias row
        ],
        out_specs=(
            pl.BlockSpec((bb, BW), batched),                   # beta (col 0 is real)
            pl.BlockSpec((bb, 2 * H), batched),                # packed new state hy|cy
        ),
        out_shape=(
            jax.ShapeDtypeStruct((batch, BW), jnp.float32),
            jax.ShapeDtypeStruct((batch, 2 * H), jnp.float32),
        ),
        input_output_aliases={2: 1},                           # state -> new_state
        compiler_params=pltpu.CompilerParams(
            dimension_semantics=("parallel",)),
        cost_estimate=pl.CostEstimate(flops=flops, transcendentals=transc,
                                      bytes_accessed=bytes_accessed),
    )

    def forward(packed, x, option, state):
        beta_full, new_state = call(x, option, state,
                                    packed["w_all"], packed["b_all"])
        return beta_full[:, :1], new_state

    # Donating the packed state lets the pallas aliasing update it in place.
    return jax.jit(forward, donate_argnums=(3,))


def init_params(key, value_size, option_dim, hidden_size):
    """PyTorch-equivalent logical params, pre-transposed to [in, out]."""
    ks = jax.random.split(key, 8)
    V, O, H = value_size, option_dim, hidden_size

    def u(k, shape, fan_in):
        bound = 1.0 / jnp.sqrt(jnp.float32(fan_in))
        return jax.random.uniform(k, shape, jnp.float32, -bound, bound)

    return {
        "w_pre": u(ks[0], (V + O, H), V + O),   # beta_pre_fc Linear(V+O, H)
        "b_pre": u(ks[1], (1, H), V + O),
        "w_ih": u(ks[2], (H, 4 * H), H),        # LSTM weight_ih^T, gate order i,f,g,o
        "b_ih": u(ks[3], (1, 4 * H), H),
        "w_hh": u(ks[4], (H, 4 * H), H),        # LSTM weight_hh^T
        "b_hh": u(ks[5], (1, 4 * H), H),
        "w_beta": u(ks[6], (H, 1), H),          # beta_layer Linear(H, 1)
        "b_beta": u(ks[7], (1, 1), H),
    }


def pack_params(p, value_size, option_dim, hidden_size, *,
                weight_dtype=jnp.float32):
    """Pack logical params into one weight slab + one bias row (host-side, one-time).

    weight_dtype=jnp.bfloat16 halves the weight-slab DMA on v6e/v7x (activations and
    accumulation stay f32); the default f32 keeps exact parity with the reference.
    """
    V, O, H = value_size, option_dim, hidden_size
    L = _layout(V, O, H)
    C = L["cols"]

    w_all = jnp.zeros((L["rows"], C), jnp.float32)
    w_all = w_all.at[L["off_px"]:L["off_px"] + V, :H].set(p["w_pre"][:V])
    w_all = w_all.at[L["off_po"]:L["off_po"] + O, :H].set(p["w_pre"][V:])
    w_all = w_all.at[L["off_ih"]:L["off_ih"] + H, :4 * H].set(p["w_ih"])
    w_all = w_all.at[L["off_hh"]:L["off_hh"] + H, :4 * H].set(p["w_hh"])
    w_all = w_all.at[L["off_bt"]:L["off_bt"] + H, 0:1].set(p["w_beta"])

    b_all = jnp.zeros((1, 3 * C), jnp.float32)
    b_all = b_all.at[:, :H].set(p["b_pre"])
    b_all = b_all.at[:, C:C + 4 * H].set(p["b_ih"] + p["b_hh"])   # fused LSTM biases
    b_all = b_all.at[:, 2 * C:2 * C + 1].set(p["b_beta"])

    return {"w_all": w_all.astype(weight_dtype),
            "b_all": b_all.astype(weight_dtype)}


def reference_forward(p, x, option, hx, cx):
    """Pure-JAX reference matching the PyTorch module (2-D input path)."""
    H = hx.shape[-1]
    xc = jnp.concatenate([x, option], axis=-1)
    pre = jnp.maximum(xc @ p["w_pre"] + p["b_pre"], 0.0)
    gates = pre @ p["w_ih"] + p["b_ih"] + hx @ p["w_hh"] + p["b_hh"]
    i_g = jax.nn.sigmoid(gates[:, 0 * H:1 * H])
    f_g = jax.nn.sigmoid(gates[:, 1 * H:2 * H])
    g_g = jnp.tanh(gates[:, 2 * H:3 * H])
    o_g = jax.nn.sigmoid(gates[:, 3 * H:4 * H])
    cy = f_g * cx + i_g * g_g
    hy = o_g * jnp.tanh(cy)
    beta = jax.nn.sigmoid(hy @ p["w_beta"] + p["b_beta"])
    return beta, (hy, cy)


if __name__ == "__main__":
    value_size, option_dim, hidden_size, batch = 28, 4, 32, 2

    key = jax.random.PRNGKey(0)
    k_param, k_x, k_opt, k_h, k_c = jax.random.split(key, 5)

    logical = init_params(k_param, value_size, option_dim, hidden_size)
    packed = pack_params(logical, value_size, option_dim, hidden_size)

    x = jax.random.normal(k_x, (batch, value_size), jnp.float32)
    option = jax.random.normal(k_opt, (batch, option_dim), jnp.float32)
    hx = jax.random.normal(k_h, (batch, hidden_size), jnp.float32)
    cx = jax.random.normal(k_c, (batch, hidden_size), jnp.float32)

    # Reference computed first (the packed state is donated by the kernel call below).
    ref_beta, (ref_hy, ref_cy) = reference_forward(logical, x, option, hx, cx)

    forward = build_beta_policy(value_size, option_dim, hidden_size, batch)
    state = jnp.concatenate([hx, cx], axis=-1)   # packed once; stays packed across steps
    beta, new_state = forward(packed, x, option, state)
    jax.block_until_ready((beta, new_state))

    hy = new_state[:, :hidden_size]
    cy = new_state[:, hidden_size:]

    assert beta.shape == (batch, 1)
    assert hy.shape == (batch, hidden_size)
    assert cy.shape == (batch, hidden_size)
    assert bool(jnp.allclose(beta, ref_beta, atol=1e-5, rtol=1e-5))
    assert bool(jnp.allclose(hy, ref_hy, atol=1e-5, rtol=1e-5))
    assert bool(jnp.allclose(cy, ref_cy, atol=1e-5, rtol=1e-5))
    print("KERNEL_OK")
</pallas_src>

<mosaic_0001>
module attributes {stable_mosaic.version = 11 : i64} {
  func.func @beta_policy_kernel(%arg0: i32, %arg1: memref<2x28xf32, #tpu.memory_space<vmem>>, %arg2: memref<2x4xf32, #tpu.memory_space<vmem>>, %arg3: memref<2x64xf32, #tpu.memory_space<vmem>>, %arg4: memref<136x128xf32, #tpu.memory_space<vmem>>, %arg5: memref<1x384xf32, #tpu.memory_space<vmem>>, %arg6: memref<2x128xf32, #tpu.memory_space<vmem>>, %arg7: memref<2x64xf32, #tpu.memory_space<vmem>>) attributes {dimension_semantics = [#tpu.dimension_semantics<parallel>], iteration_bounds = array<i64: 1>, scalar_prefetch = 0 : i64, scratch_operands = 0 : i64, tpu.core_type = #tpu.core_type<tc>, window_params = [{transform_indices = @transform_0, window_bounds = array<i64: 2, 28>}, {transform_indices = @transform_1, window_bounds = array<i64: 2, 4>}, {transform_indices = @transform_2, window_bounds = array<i64: 2, 64>}, {pipeline_mode = #tpu.pipeline_mode<synchronous>, transform_indices = @transform_3, window_bounds = array<i64: 136, 128>}, {pipeline_mode = #tpu.pipeline_mode<synchronous>, transform_indices = @transform_4, window_bounds = array<i64: 1, 384>}, {transform_indices = @transform_5, window_bounds = array<i64: 2, 128>}, {transform_indices = @transform_6, window_bounds = array<i64: 2, 64>}]} {
    %c0 = arith.constant 0 : index
    %c0_0 = arith.constant 0 : index
    %0 = vector.load %arg1[%c0, %c0_0] : memref<2x28xf32, #tpu.memory_space<vmem>>, vector<2x28xf32>
    %c0_1 = arith.constant 0 : index
    %c0_2 = arith.constant 0 : index
    %1 = vector.load %arg2[%c0_1, %c0_2] : memref<2x4xf32, #tpu.memory_space<vmem>>, vector<2x4xf32>
    %c0_3 = arith.constant 0 : index
    %c0_4 = arith.constant 0 : index
    %2 = vector.load %arg3[%c0_3, %c0_4] : memref<2x64xf32, #tpu.memory_space<vmem>>, vector<2x32xf32>
    %c0_5 = arith.constant 0 : index
    %c32 = arith.constant 32 : index
    %3 = vector.load %arg3[%c0_5, %c32] : memref<2x64xf32, #tpu.memory_space<vmem>>, vector<2x32xf32>
    %c0_6 = arith.constant 0 : index
    %c0_7 = arith.constant 0 : index
    %4 = vector.load %arg4[%c0_6, %c0_7] : memref<136x128xf32, #tpu.memory_space<vmem>>, vector<28x32xf32>
    %cst = arith.constant dense<0.000000e+00> : vector<2x32xf32>
    %5 = tpu.matmul %0, %4, %cst {dimension_numbers = #tpu.dot_dimension_numbers<[1], [0], [0], [1], [0, 0, 1, 1], [], []>} : vector<2x28xf32>, vector<28x32xf32>, vector<2x32xf32> -> vector<2x32xf32>
    %c32_8 = arith.constant 32 : index
    %c0_9 = arith.constant 0 : index
    %6 = vector.load %arg4[%c32_8, %c0_9] : memref<136x128xf32, #tpu.memory_space<vmem>>, vector<4x32xf32>
    %cst_10 = arith.constant dense<0.000000e+00> : vector<2x32xf32>
    %7 = tpu.matmul %1, %6, %cst_10 {dimension_numbers = #tpu.dot_dimension_numbers<[1], [0], [0], [1], [0, 0, 1, 1], [], []>} : vector<2x4xf32>, vector<4x32xf32>, vector<2x32xf32> -> vector<2x32xf32>
    %8 = arith.addf %5, %7 : vector<2x32xf32>
    %c0_11 = arith.constant 0 : index
    %c0_12 = arith.constant 0 : index
    %9 = vector.load %arg5[%c0_11, %c0_12] : memref<1x384xf32, #tpu.memory_space<vmem>>, vector<1x32xf32>
    %10 = vector.broadcast %9 : vector<1x32xf32> to vector<2x32xf32>
    %11 = arith.addf %8, %10 : vector<2x32xf32>
    %cst_13 = arith.constant 0.000000e+00 : f32
    %12 = vector.broadcast %cst_13 : f32 to vector<2x32xf32>
    %13 = arith.maximumf %11, %12 : vector<2x32xf32>
    %c40 = arith.constant 40 : index
    %c0_14 = arith.constant 0 : index
    %14 = vector.load %arg4[%c40, %c0_14] : memref<136x128xf32, #tpu.memory_space<vmem>>, vector<32x128xf32>
    %cst_15 = arith.constant dense<0.000000e+00> : vector<2x128xf32>
    %15 = tpu.matmul %13, %14, %cst_15 {dimension_numbers = #tpu.dot_dimension_numbers<[1], [0], [0], [1], [0, 0, 1, 1], [], []>} : vector<2x32xf32>, vector<32x128xf32>, vector<2x128xf32> -> vector<2x128xf32>
    %c72 = arith.constant 72 : index
    %c0_16 = arith.constant 0 : index
    %16 = vector.load %arg4[%c72, %c0_16] : memref<136x128xf32, #tpu.memory_space<vmem>>, vector<32x128xf32>
    %cst_17 = arith.constant dense<0.000000e+00> : vector<2x128xf32>
    %17 = tpu.matmul %2, %16, %cst_17 {dimension_numbers = #tpu.dot_dimension_numbers<[1], [0], [0], [1], [0, 0, 1, 1], [], []>} : vector<2x32xf32>, vector<32x128xf32>, vector<2x128xf32> -> vector<2x128xf32>
    %18 = arith.addf %15, %17 : vector<2x128xf32>
    %c0_18 = arith.constant 0 : index
    %c128 = arith.constant 128 : index
    %19 = vector.load %arg5[%c0_18, %c128] : memref<1x384xf32, #tpu.memory_space<vmem>>, vector<1x128xf32>
    %20 = vector.broadcast %19 : vector<1x128xf32> to vector<2x128xf32>
    %21 = arith.addf %18, %20 : vector<2x128xf32>
    %22 = arith.negf %21 : vector<2x128xf32>
    %23 = math.exp %22 : vector<2x128xf32>
    %cst_19 = arith.constant 1.000000e+00 : f32
    %24 = vector.broadcast %cst_19 : f32 to vector<2x128xf32>
    %25 = arith.addf %24, %23 : vector<2x128xf32>
    %26 = arith.divf %24, %25 : vector<2x128xf32>
    %27 = math.tanh %21 : vector<2x128xf32>
    %28 = vector.extract_strided_slice %26 {offsets = [0, 0], sizes = [2, 32], strides = [1, 1]} : vector<2x128xf32> to vector<2x32xf32>
    %29 = vector.extract_strided_slice %26 {offsets = [0, 32], sizes = [2, 32], strides = [1, 1]} : vector<2x128xf32> to vector<2x32xf32>
    %30 = vector.extract_strided_slice %27 {offsets = [0, 64], sizes = [2, 32], strides = [1, 1]} : vector<2x128xf32> to vector<2x32xf32>
    %31 = vector.extract_strided_slice %26 {offsets = [0, 96], sizes = [2, 32], strides = [1, 1]} : vector<2x128xf32> to vector<2x32xf32>
    %32 = arith.mulf %29, %3 : vector<2x32xf32>
    %33 = arith.mulf %28, %30 : vector<2x32xf32>
    %34 = arith.addf %32, %33 : vector<2x32xf32>
    %35 = math.tanh %34 : vector<2x32xf32>
    %36 = arith.mulf %31, %35 : vector<2x32xf32>
    %c0_20 = arith.constant 0 : index
    %c0_21 = arith.constant 0 : index
    %37 = vector.load %arg7[%c0_20, %c0_21] : memref<2x64xf32, #tpu.memory_space<vmem>>, vector<2x32xf32>
    tpu.vector_store %arg7[%c0_20, %c0_21], %36 {strides = array<i32>} : memref<2x64xf32, #tpu.memory_space<vmem>>, vector<2x32xf32>,
    %c0_22 = arith.constant 0 : index
    %c32_23 = arith.constant 32 : index
    %38 = vector.load %arg7[%c0_22, %c32_23] : memref<2x64xf32, #tpu.memory_space<vmem>>, vector<2x32xf32>
    tpu.vector_store %arg7[%c0_22, %c32_23], %34 {strides = array<i32>} : memref<2x64xf32, #tpu.memory_space<vmem>>, vector<2x32xf32>,
    %c104 = arith.constant 104 : index
    %c0_24 = arith.constant 0 : index
    %39 = vector.load %arg4[%c104, %c0_24] : memref<136x128xf32, #tpu.memory_space<vmem>>, vector<32x128xf32>
    %cst_25 = arith.constant dense<0.000000e+00> : vector<2x128xf32>
    %40 = tpu.matmul %36, %39, %cst_25 {dimension_numbers = #tpu.dot_dimension_numbers<[1], [0], [0], [1], [0, 0, 1, 1], [], []>} : vector<2x32xf32>, vector<32x128xf32>, vector<2x128xf32> -> vector<2x128xf32>
    %c0_26 = arith.constant 0 : index
    %c256 = arith.constant 256 : index
    %41 = vector.load %arg5[%c0_26, %c256] : memref<1x384xf32, #tpu.memory_space<vmem>>, vector<1x128xf32>
    %42 = vector.broadcast %41 : vector<1x128xf32> to vector<2x128xf32>
    %43 = arith.addf %40, %42 : vector<2x128xf32>
    %44 = arith.negf %43 : vector<2x128xf32>
    %45 = math.exp %44 : vector<2x128xf32>
    %cst_27 = arith.constant 1.000000e+00 : f32
    %46 = vector.broadcast %cst_27 : f32 to vector<2x128xf32>
    %47 = arith.addf %46, %45 : vector<2x128xf32>
    %48 = arith.divf %46, %47 : vector<2x128xf32>
    %c0_28 = arith.constant 0 : index
    %c0_29 = arith.constant 0 : index
    %49 = vector.load %arg6[%c0_28, %c0_29] : memref<2x128xf32, #tpu.memory_space<vmem>>, vector<2x128xf32>
    tpu.vector_store %arg6[%c0_28, %c0_29], %48 {strides = array<i32>} : memref<2x128xf32, #tpu.memory_space<vmem>>, vector<2x128xf32>,
    return
  }
  func.func @transform_0(%arg0: i32) -> (i32, i32) {
    %c0_i32 = arith.constant 0 : i32
    %c0_i32_0 = arith.constant 0 : i32
    return %arg0, %c0_i32 : i32, i32
  }
  func.func @transform_1(%arg0: i32) -> (i32, i32) {
    %c0_i32 = arith.constant 0 : i32
    %c0_i32_0 = arith.constant 0 : i32
    return %arg0, %c0_i32 : i32, i32
  }
  func.func @transform_2(%arg0: i32) -> (i32, i32) {
    %c0_i32 = arith.constant 0 : i32
    %c0_i32_0 = arith.constant 0 : i32
    return %arg0, %c0_i32 : i32, i32
  }
  func.func @transform_3(%arg0: i32) -> (i32, i32) {
    %c0_i32 = arith.constant 0 : i32
    %c0_i32_0 = arith.constant 0 : i32
    %c0_i32_1 = arith.constant 0 : i32
    return %c0_i32, %c0_i32_0 : i32, i32
  }
  func.func @transform_4(%arg0: i32) -> (i32, i32) {
    %c0_i32 = arith.constant 0 : i32
    %c0_i32_0 = arith.constant 0 : i32
    %c0_i32_1 = arith.constant 0 : i32
    return %c0_i32, %c0_i32_0 : i32, i32
  }
  func.func @transform_5(%arg0: i32) -> (i32, i32) {
    %c0_i32 = arith.constant 0 : i32
    %c0_i32_0 = arith.constant 0 : i32
    return %arg0, %c0_i32 : i32, i32
  }
  func.func @transform_6(%arg0: i32) -> (i32, i32) {
    %c0_i32 = arith.constant 0 : i32
    %c0_i32_0 = arith.constant 0 : i32
    return %arg0, %c0_i32 : i32, i32
  }
}

</mosaic_0001>

<llo_original>
// kernel: forward.1
$region0: #{forward.1}
  #allocation0 [shape = 'u32[]', space=smem, size = 0x4, offset = 0x4, fixed_abs, tag = 'smem constant byte address 0x4 - core index']
  #allocation1 [shape = 'u32[72,128]{1,0:T(1,128)}', space=vmem, size = 0x9000, scoped, tag = 'internal scratch']
  %s0 = inlined_call_operand.hbm [shape: f32[2,28], index: 0, kind: input, shape index: {}]
  %s1 = inlined_call_operand.vmem [shape: f32[2,4], index: 1, kind: input, shape index: {}]
  %s2 = inlined_call_operand.hbm [shape: f32[2,64], index: 2, kind: input, shape index: {}, may-alias: {2,6}]
  %s3 = inlined_call_operand.hbm [shape: f32[136,128], index: 3, kind: input, shape index: {}]
  %s4 = inlined_call_operand.hbm [shape: f32[1,384], index: 4, kind: input, shape index: {}]
  %s5 = inlined_call_operand.vmem [shape: f32[2,128], index: 5, kind: output, shape index: {0}]
  %s6 = inlined_call_operand.hbm [shape: f32[2,64], index: 6, kind: output, shape index: {1}, may-alias: {2,6}]
  %7 = xla_tuple %s5, %s6
  %s8 = sld [smem:[#allocation0]]
  $region54: #{forward.1} parent=0
    _
  %s10 = ssub.s32 1, %s8
  %s11 = scalar_select 0, %s10, %s8
  $region1: #{forward.1} parent=0
    #allocation2 [shape = 'u8[1024]{0}', space=vmem, size = 0x400, scoped, tag = 'input window, operand 0, single buffered']
    #allocation3 [shape = 's32[1]{0}', space=sflag, size = 0x4, scoped, tag = 'scoped memory for forward.1']
    #allocation4 [shape = 's32[1]{0}', space=sflag, size = 0x4, scoped, tag = 'scoped memory for forward.1']
    #allocation5 [shape = 'u8[1024]{0}', space=vmem, size = 0x400, scoped, tag = 'input window, operand 2, single buffered']
    #allocation6 [shape = 's32[1]{0}', space=sflag, size = 0x4, scoped, tag = 'scoped memory for forward.1']
    #allocation7 [shape = 'u8[69632]{0}', space=vmem, size = 0x11000, scoped, tag = 'input window, operand 3, single buffered']
    #allocation8 [shape = 'u8[1536]{0}', space=vmem, size = 0x800, scoped, tag = 'input window, operand 4, single buffered']
    #allocation9 [shape = 's32[1]{0}', space=sflag, size = 0x4, scoped, tag = 'scoped memory for forward.1']
    #allocation10 [shape = 'u8[1024]{0}', space=vmem, size = 0x400, scoped, tag = 'output window, operand 1, single buffered']
    %12 = vsyncpa [#allocation3], 0
    %13 = vsyncpa [#allocation6], 0
    %14 = vsyncpa [#allocation9], 0
    %15 = vsyncpa [#allocation4], 0
    // Predicated region
    $region2: #{forward.1} parent=1 // pred_check
      _
    $region3: #{forward.1} parent=1 // pred_check_branch
      %17 = sbr.rel (0) target = $region5
    $region4: #{forward.1} parent=1 // pred_region
      %19 = vsyncadd [#allocation3], 0
      %s21 = sshll.u32 %s0, 4
      %s22 = int_to_ptr.hbm [resolvable:$true] %s21
      %s23 = sshll.u32 [#allocation2], 4
      %s24 = int_to_ptr.vmem [resolvable:$true] %s23
      %26 = dma.hbm_to_vmem [thread:$0]  %s22, 32, %s24, [#allocation3]
    $region5: #{forward.1} parent=1 // pred_fallthru
      _
    // Predicated region
    $region6: #{forward.1} parent=1 // pred_check
      _
    $region7: #{forward.1} parent=1 // pred_check_branch
      %28 = sbr.rel (0) target = $region9
    $region8: #{forward.1} parent=1 // pred_region
      _
    $region9: #{forward.1} parent=1 // pred_fallthru
      _
    // Predicated region
    $region10: #{forward.1} parent=1 // pred_check
      _
    $region11: #{forward.1} parent=1 // pred_check_branch
      %30 = sbr.rel (0) target = $region13
    $region12: #{forward.1} parent=1 // pred_region
      %32 = vsyncadd [#allocation6], 0
      %s34 = sshll.u32 %s2, 4
      %s35 = int_to_ptr.hbm [resolvable:$true] %s34
      %s36 = sshll.u32 [#allocation5], 4
      %s37 = int_to_ptr.vmem [resolvable:$true] %s36
      %39 = dma.hbm_to_vmem [thread:$0]  %s35, 32, %s37, [#allocation6]
    $region13: #{forward.1} parent=1 // pred_fallthru
      _
    // Predicated region
    $region14: #{forward.1} parent=1 // pred_check
      _
    $region15: #{forward.1} parent=1 // pred_check_branch
      %41 = sbr.rel (0) target = $region17
    $region16: #{forward.1} parent=1 // pred_region
      %43 = vsyncadd [#allocation6], 0
      %s44 = sshll.u32 %s3, 4
      %s45 = int_to_ptr.hbm [resolvable:$true] %s44
      %s46 = sshll.u32 [#allocation7], 4
      %s47 = int_to_ptr.vmem [resolvable:$true] %s46
      %52 = dma.hbm_to_vmem [thread:$0]  %s45, 2176, %s47, [#allocation6], 128, 128, 8
    $region17: #{forward.1} parent=1 // pred_fallthru
      _
    // Predicated region
    $region18: #{forward.1} parent=1 // pred_check
      _
    $region19: #{forward.1} parent=1 // pred_check_branch
      %54 = sbr.rel (0) target = $region21
    $region20: #{forward.1} parent=1 // pred_region
      %56 = vsyncadd [#allocation9], 0
      %s58 = sshll.u32 %s4, 4
      %s59 = int_to_ptr.hbm [resolvable:$true] %s58
      %s60 = sshll.u32 [#allocation8], 4
      %s61 = int_to_ptr.vmem [resolvable:$true] %s60
      %63 = dma.hbm_to_vmem [thread:$0]  %s59, 48, %s61, [#allocation9]
    $region21: #{forward.1} parent=1 // pred_fallthru
      _
    // Predicated region
    $region22: #{forward.1} parent=1 // pred_check
      _
    $region23: #{forward.1} parent=1 // pred_check_branch
      %65 = sbr.rel (0) target = $region25
    $region24: #{forward.1} parent=1 // pred_region
      %67 = dma.done [#allocation3], 32
    $region25: #{forward.1} parent=1 // pred_fallthru
      _
    // Predicated region
    $region26: #{forward.1} parent=1 // pred_check
      _
    $region27: #{forward.1} parent=1 // pred_check_branch
      %69 = sbr.rel (0) target = $region29
    $region28: #{forward.1} parent=1 // pred_region
      %71 = dma.done [#allocation6], 32
    $region29: #{forward.1} parent=1 // pred_fallthru
      _
    // Predicated region
    $region30: #{forward.1} parent=1 // pred_check
      _
    $region31: #{forward.1} parent=1 // pred_check_branch
      %73 = sbr.rel (0) target = $region33
    $region32: #{forward.1} parent=1 // pred_region
      %75 = dma.done [#allocation6], 2176
    $region33: #{forward.1} parent=1 // pred_fallthru
      _
    // Predicated region
    $region34: #{forward.1} parent=1 // pred_check
      _
    $region35: #{forward.1} parent=1 // pred_check_branch
      %77 = sbr.rel (0) target = $region37
    $region36: #{forward.1} parent=1 // pred_region
      %79 = dma.done [#allocation9], 48
    $region37: #{forward.1} parent=1 // pred_fallthru
      _
    %v80 = vld [vmem:[#allocation2] sm:$0x3]
    %v81 = vld [vmem:[%s1] sm:$0x3]
    %v82 = vld [vmem:[#allocation5] sm:$0x3]
    %v83 = vld [vmem:[#allocation7] sm:$0xff]
    %v84 = vld [vmem:[#allocation7 + $0x8] sm:$0xff]
    %v85 = vld [vmem:[#allocation7 + $0x10] sm:$0xff]
    %v86 = vld [vmem:[#allocation7 + $0x18] sm:$0xf]
    %v87 = vld [vmem:[#allocation7 + $0x20] sm:$0xf]
    %vm88 = vcmask 31744
    %v90 = vsel %vm88, %v81, 0
    %vm92 = vcmask 1043456
    %v94 = vsel %vm92, %v87, 0
    %96 = vmatpush.msra.mxu0 0.0
    %97 = vmatpush.msra.mxu0 0.0
    %98 = vmatpush.msra.mxu0 0.0
    %99 = vmatpush.msra.mxu0 0.0
    %100 = vmatpush.msra.mxu0 0.0
    %101 = vmatpush.msra.mxu0 0.0
    %102 = vmatpush.msra.mxu0 0.0
    %103 = vmatpush.msra.mxu0 0.0
    %104 = vmatpush.msra.mxu0 0.0
    %105 = vmatpush.msra.mxu0 0.0
    %106 = vmatpush.msra.mxu0 0.0
    %107 = vmatpush.msra.mxu0 0.0
    %108 = vmatpush.msra.mxu0 0.0
    %109 = vmatpush.msra.mxu0 0.0
    %110 = vmatpush.msra.mxu0 0.0
    %111 = vmatpush.msra.mxu0 %v94
    %112 = vmatmul.f32.gmra.mxu0 %v90
    %v113 = vpop.f32.mrf.mxu0
    %v114 = vadd.f32 0.0, %v113
    %115 = vdwg.mxu0
    %vm116 = vcmask 228352
    %v118 = vsel %vm116, %v80, 0
    %v121 = vsel %vm92, %v86, 0
    %123 = vmatpush.msra.mxu0 0.0
    %124 = vmatpush.msra.mxu0 0.0
    %125 = vmatpush.msra.mxu0 0.0
    %126 = vmatpush.msra.mxu0 0.0
    %127 = vmatpush.msra.mxu0 0.0
    %128 = vmatpush.msra.mxu0 0.0
    %129 = vmatpush.msra.mxu0 0.0
    %130 = vmatpush.msra.mxu0 0.0
    %131 = vmatpush.msra.mxu0 0.0
    %132 = vmatpush.msra.mxu0 0.0
    %133 = vmatpush.msra.mxu0 0.0
    %134 = vmatpush.msra.mxu0 0.0
    %135 = vmatpush.msra.mxu0 %v121
    %136 = vmatpush.msra.mxu0 %v85
    %137 = vmatpush.msra.mxu0 %v84
    %138 = vmatpush.msra.mxu0 %v83
    %139 = vmatmul.f32.gmra.mxu0 %v118
    %v140 = vpop.f32.mrf.mxu0
    %v141 = vadd.f32 %v114, %v140
    %142 = vdwg.mxu0
    %v143 = vld [vmem:[#allocation8] sm:$0x1]
    %v145 = vperm.slane %v143, 0
    %v147 = vadd.f32 %v141, %v145
    %v148 = vmax.f32 %v147, 0.0
    %v149 = vld [vmem:[#allocation7 + $0x28] sm:$0xff]
    %v150 = vld [vmem:[#allocation7 + $0x30] sm:$0xff]
    %v151 = vld [vmem:[#allocation7 + $0x38] sm:$0xff]
    %v152 = vld [vmem:[#allocation7 + $0x40] sm:$0xff]
    %v153 = vld [vmem:[#allocation7 + $0x48] sm:$0xff]
    %v154 = vld [vmem:[#allocation7 + $0x50] sm:$0xff]
    %v155 = vld [vmem:[#allocation7 + $0x58] sm:$0xff]
    %v156 = vld [vmem:[#allocation7 + $0x60] sm:$0xff]
    %vm157 = vcmask 261120
    %v159 = vsel %vm157, %v82, 0
    %161 = vmatpush.msra.mxu0 0.0
    %162 = vmatpush.msra.mxu0 0.0
    %163 = vmatpush.msra.mxu0 0.0
    %164 = vmatpush.msra.mxu0 0.0
    %165 = vmatpush.msra.mxu0 0.0
    %166 = vmatpush.msra.mxu0 0.0
    %167 = vmatpush.msra.mxu0 0.0
    %168 = vmatpush.msra.mxu0 0.0
    %169 = vmatpush.msra.mxu0 0.0
    %170 = vmatpush.msra.mxu0 0.0
    %171 = vmatpush.msra.mxu0 0.0
    %172 = vmatpush.msra.mxu0 0.0
    %173 = vmatpush.msra.mxu0 %v156
    %174 = vmatpush.msra.mxu0 %v155
    %175 = vmatpush.msra.mxu0 %v154
    %176 = vmatpush.msra.mxu0 %v153
    %177 = vmatmul.f32.gmra.mxu0 %v159
    %v178 = vpop.f32.mrf.mxu0
    %v179 = vadd.f32 0.0, %v178
    %180 = vdwg.mxu0
    %v182 = vsel %vm157, %v148, 0
    %184 = vmatpush.msra.mxu0 0.0
    %185 = vmatpush.msra.mxu0 0.0
    %186 = vmatpush.msra.mxu0 0.0
    %187 = vmatpush.msra.mxu0 0.0
    %188 = vmatpush.msra.mxu0 0.0
    %189 = vmatpush.msra.mxu0 0.0
    %190 = vmatpush.msra.mxu0 0.0
    %191 = vmatpush.msra.mxu0 0.0
    %192 = vmatpush.msra.mxu0 0.0
    %193 = vmatpush.msra.mxu0 0.0
    %194 = vmatpush.msra.mxu0 0.0
    %195 = vmatpush.msra.mxu0 0.0
    %196 = vmatpush.msra.mxu0 %v152
    %197 = vmatpush.msra.mxu0 %v151
    %198 = vmatpush.msra.mxu0 %v150
    %199 = vmatpush.msra.mxu0 %v149
    %200 = vmatmul.f32.gmra.mxu0 %v182
    %v201 = vpop.f32.mrf.mxu0
    %v202 = vadd.f32 %v179, %v201
    %203 = vdwg.mxu0
    %v204 = vld [vmem:[#allocation8 + $0x1] sm:$0x1]
    %v206 = vperm.slane %v204, 0
    %v208 = vadd.f32 %v202, %v206
    %v209 = vxor.u32 %v208, 2147483648
    %v210 = vmul.f32 %v209, 1.442695
    %v211 = vpow.pop %v210
    %v212 = vadd.f32 %v211, 1.0
    %v213 = vrcp.pop %v212
    %v214 = vmul.f32 %v212, %v213
    %v215 = vsub.f32 1.0, %v214
    %v216 = vmul.f32 %v213, %v215
    %v217 = vadd.f32 %v213, %v216
    %vm218 = vweird.f32 %v212
    %vm219 = vweird.f32 %v213
    %vm220 = vmor %vm218, %vm219
    %v221 = vsel %vm220, %v213, %v217
    %v222 = vand.u32 2147483647, %v212
    %vm223 = vcmp.eq.f32.partialorder %v222, 8.507059e+37
    %v224 = vand.u32 %v212, 2147483648
    %v225 = vor.u32 1.1754944e-38, %v224
    %v226 = vsel %vm223, %v225, %v221
    %v227 = vmul.f32 1.0, %v226
    %v228 = vtanh.pop %v208
    %v229 = vmul.f32 %v227, %v82
    %231 = vrot.lane.b32.xlu0 %v228, 64
    %v232 = vpop.permute.xlu0 %231
    %v234 = vmul.f32 %v227, %v232
    %236 = vrot.lane.b32.xlu0 %v234, 32
    %v237 = vpop.permute.xlu0 %236
    %v239 = vadd.f32 %v229, %v237
    %v240 = vtanh.pop %v239
    %242 = vrot.lane.b32.xlu0 %v240, 64
    %v243 = vpop.permute.xlu0 %242
    %v245 = vmul.f32 %v227, %v243
    %247 = vrot.lane.b32.xlu0 %v245, 32
    %v248 = vpop.permute.xlu0 %247
    %vm250 = vcmask 254976
    %251 = vst.msk [vmem:[#allocation10] sm:$0x3] %vm250, %v248
    %vm252 = vcmask 517376
    %253 = vst.msk [vmem:[#allocation10] sm:$0x3] %vm252, %v239
    %v254 = vld [vmem:[#allocation7 + $0x68] sm:$0xff]
    %v255 = vld [vmem:[#allocation7 + $0x70] sm:$0xff]
    %v256 = vld [vmem:[#allocation7 + $0x78] sm:$0xff]
    %v257 = vld [vmem:[#allocation7 + $0x80] sm:$0xff]
    %v258 = vld [vmem:[#allocation8 + $0x2] sm:$0x1]
    %v260 = vperm.slane %v258, 0
    %v262 = vsel %vm157, %v248, 0
    %264 = vmatpush.msra.mxu0 0.0
    %265 = vmatpush.msra.mxu0 0.0
    %266 = vmatpush.msra.mxu0 0.0
    %267 = vmatpush.msra.mxu0 0.0
    %268 = vmatpush.msra.mxu0 0.0
    %269 = vmatpush.msra.mxu0 0.0
    %270 = vmatpush.msra.mxu0 0.0
    %271 = vmatpush.msra.mxu0 0.0
    %272 = vmatpush.msra.mxu0 0.0
    %273 = vmatpush.msra.mxu0 0.0
    %274 = vmatpush.msra.mxu0 0.0
    %275 = vmatpush.msra.mxu0 0.0
    %276 = vmatpush.msra.mxu0 %v257
    %277 = vmatpush.msra.mxu0 %v256
    %278 = vmatpush.msra.mxu0 %v255
    %279 = vmatpush.msra.mxu0 %v254
    %280 = vmatmul.f32.gmra.mxu0 %v262
    %v281 = vpop.f32.mrf.mxu0
    %v282 = vadd.f32 %v260, %v281
    %283 = vdwg.mxu0
    %v284 = vxor.u32 %v282, 2147483648
    %v285 = vmul.f32 %v284, 1.442695
    %v286 = vpow.pop %v285
    %v287 = vadd.f32 %v286, 1.0
    %v288 = vrcp.pop %v287
    %v289 = vmul.f32 %v287, %v288
    %v290 = vsub.f32 1.0, %v289
    %v291 = vmul.f32 %v288, %v290
    %v292 = vadd.f32 %v288, %v291
    %vm293 = vweird.f32 %v287
    %vm294 = vweird.f32 %v288
    %vm295 = vmor %vm293, %vm294
    %v296 = vsel %vm295, %v288, %v292
    %v297 = vand.u32 2147483647, %v287
    %vm298 = vcmp.eq.f32.partialorder %v297, 8.507059e+37
    %v299 = vand.u32 %v287, 2147483648
    %v300 = vor.u32 1.1754944e-38, %v299
    %v301 = vsel %vm298, %v300, %v296
    %v302 = vmul.f32 1.0, %v301
    %303 = vst [vmem:[%s5] sm:$0x3] %v302
    // Predicated region
    $region38: #{forward.1} parent=1 // pred_check
      _
    $region39: #{forward.1} parent=1 // pred_check_branch
      %305 = sbr.rel (0) target = $region41
    $region40: #{forward.1} parent=1 // pred_region
      _
    $region41: #{forward.1} parent=1 // pred_fallthru
      _
    // Predicated region
    $region42: #{forward.1} parent=1 // pred_check
      _
    $region43: #{forward.1} parent=1 // pred_check_branch
      %307 = sbr.rel (0) target = $region45
    $region44: #{forward.1} parent=1 // pred_region
      %309 = vsyncadd [#allocation4], 0
      %s311 = sshll.u32 [#allocation10], 4
      %s312 = int_to_ptr.vmem [resolvable:$true] %s311
      %s313 = sshll.u32 %s6, 4
      %s314 = int_to_ptr.hbm [resolvable:$true] %s313
      %316 = dma.vmem_to_hbm [thread:$0]  %s312, 32, %s314, [#allocation4]
    $region45: #{forward.1} parent=1 // pred_fallthru
      _
    // Predicated region
    $region46: #{forward.1} parent=1 // pred_check
      _
    $region47: #{forward.1} parent=1 // pred_check_branch
      %318 = sbr.rel (0) target = $region49
    $region48: #{forward.1} parent=1 // pred_region
      _
    $region49: #{forward.1} parent=1 // pred_fallthru
      _
    // Predicated region
    $region50: #{forward.1} parent=1 // pred_check
      _
    $region51: #{forward.1} parent=1 // pred_check_branch
      %320 = sbr.rel (0) target = $region53
    $region52: #{forward.1} parent=1 // pred_region
      %322 = dma.done [#allocation4], 32
    $region53: #{forward.1} parent=1 // pred_fallthru
      _
    %323 = vsyncpa [#allocation3], 1
    %324 = vsyncpa [#allocation6], 1
    %325 = vsyncpa [#allocation9], 1
    %326 = vsyncpa [#allocation4], 1

</llo_original>
